<compile_context>
chip_gen: v5e
topology: v5e:2x2
jax: 0.10.0
libtpu: 0.0.40
codegen_flags: <defaults>
</compile_context>

<pallas_src>
import functools

import jax
import jax.numpy as jnp
from jax.experimental import pallas as pl
from jax.experimental.pallas import tpu as pltpu

CPAD = 128   # lane-dense channel padding (128-lane vreg boundary)
NPAD_MULT = 128  # pad node count to a multiple of this for full MXU occupancy


def _round_up(n, m):
    return ((n + m - 1) // m) * m


def _fused_sage_kernel(a_ref, x_ref, w_ref, b_ref, o_ref, *, num_layers):
    """Whole network, no grid.  a_ref: (NPAD, NPAD) bf16 adjacency (A[dst, src] = mult),
    x_ref: (NPAD, CPAD) f32 features, w_ref: (L, 2, CPAD, CPAD) f32 packed [W_l, W_r]
    (pre-transposed to (Cin, Cout)), b_ref: (L, 1, CPAD) f32, o_ref: (NPAD, CPAD) f32."""
    a = a_ref[...]                       # (NPAD, NPAD) bf16 — stays bf16 (MXU-native)
    feat = x_ref[...]                    # (NPAD, CPAD) f32 inter-layer carry (local value)

    for layer in range(num_layers):      # static unroll: whole schedule visible to LLO
        # aggr='add': scatter-add over edges == dense A @ feat on the MXU.
        # bf16 x bf16 inputs, f32 accumulation — the native MXU mode on v5e/v6e/v7x.
        agg = jnp.dot(a, feat.astype(jnp.bfloat16),
                      preferred_element_type=jnp.float32)                 # (NPAD, CPAD) f32

        # lin_l(agg) + lin_r(feat) + b_l: two accumulating dots on static weight slices
        # (no (rows, 2*CPAD) concat temp).
        h = jnp.dot(agg, w_ref[layer, 0], preferred_element_type=jnp.float32)
        h = h + jnp.dot(feat, w_ref[layer, 1], preferred_element_type=jnp.float32)
        h = h + b_ref[layer]                                              # (1, CPAD) bcast

        # normalize=True -> F.normalize(h, dim=-1, eps=1e-12): h / max(||h||, 1e-12)
        #                == h * rsqrt(max(||h||^2, 1e-24)); rsqrt uses the idle EUP slot.
        sumsq = jnp.sum(h * h, axis=-1, keepdims=True)
        h = h * jax.lax.rsqrt(jnp.maximum(sumsq, 1e-24))

        # dropout(p=0.15) in eval mode: identity.  ELU(alpha=1); post-normalize |h| <= 1 so
        # the clamped exp argument is safe.
        h = jnp.where(h > 0, h, jnp.exp(jnp.minimum(h, 0.0)) - 1.0)

        feat = h

    o_ref[...] = feat


@functools.partial(jax.jit, static_argnames=("num_nodes", "hidden_channels"))
def graphsage_forward(x_pad, adj, w_packed, b_packed, *, num_nodes, hidden_channels):
    """x_pad: (NPAD, CPAD) f32, adj: (NPAD, NPAD) bf16, w_packed: (L, 2, CPAD, CPAD) f32,
    b_packed: (L, 1, CPAD) f32.  Returns (num_nodes, hidden_channels) f32."""
    npad, cpad = x_pad.shape
    num_layers = w_packed.shape[0]

    kernel = functools.partial(_fused_sage_kernel, num_layers=num_layers)
    vmem_spec = pl.BlockSpec(memory_space=pltpu.MemorySpace.VMEM)

    out = pl.pallas_call(
        kernel,
        out_shape=jax.ShapeDtypeStruct((npad, cpad), jnp.float32),
        in_specs=[vmem_spec, vmem_spec, vmem_spec, vmem_spec],   # everything VMEM-resident
        out_specs=vmem_spec,
        compiler_params=pltpu.CompilerParams(
            vmem_limit_bytes=64 * 1024 * 1024,   # explicit: v5e default 16 MiB, v7x 32 MiB
        ),
    )(adj, x_pad, w_packed, b_packed)
    return out[:num_nodes, :hidden_channels]


def init_packed_params(key, in_channels, hidden_channels, num_layers, cpad=CPAD):
    """SAGEConv params per layer: W_l (Cout,Cin), b_l (Cout,), W_r (Cout,Cin).
    Stored pre-transposed to (Cin,Cout), zero-padded to CPAD lanes, packed as
    (L, 2, CPAD, CPAD) so the kernel slices w[l, 0] / w[l, 1] statically."""
    ws, bs = [], []
    c_in = in_channels
    for _ in range(num_layers):
        key, k1, k2, k3 = jax.random.split(key, 4)
        scale = 1.0 / jnp.sqrt(jnp.float32(c_in))
        w_l = jax.random.uniform(k1, (c_in, hidden_channels), jnp.float32, -scale, scale)
        b_l = jax.random.uniform(k2, (hidden_channels,), jnp.float32, -scale, scale)
        w_r = jax.random.uniform(k3, (c_in, hidden_channels), jnp.float32, -scale, scale)

        w_l_p = jnp.zeros((cpad, cpad), jnp.float32).at[:c_in, :hidden_channels].set(w_l)
        w_r_p = jnp.zeros((cpad, cpad), jnp.float32).at[:c_in, :hidden_channels].set(w_r)
        b_p = jnp.zeros((1, cpad), jnp.float32).at[0, :hidden_channels].set(b_l)

        ws.append(jnp.stack([w_l_p, w_r_p], axis=0))          # (2, CPAD, CPAD)
        bs.append(b_p)                                        # (1, CPAD)
        c_in = hidden_channels
    return jnp.stack(ws), jnp.stack(bs)                       # (L,2,CPAD,CPAD), (L,1,CPAD)


def edge_index_to_dense_adj(edge_index, num_nodes, npad):
    """Glue: (2,E) edge list -> dense (NPAD,NPAD) adjacency with A[dst,src] = multiplicity.
    Stored as bf16 (exact for integer multiplicities <= 256) to feed the MXU directly and
    halve the N^2 byte stream.  Padded rows/cols stay zero, so padding nodes never
    contribute to real rows."""
    src, dst = edge_index[0], edge_index[1]
    adj = jnp.zeros((npad, npad), jnp.float32).at[dst, src].add(1.0)
    return adj.astype(jnp.bfloat16)


def pad_features(x, npad, cpad=CPAD):
    n, c = x.shape
    return jnp.zeros((npad, cpad), x.dtype).at[:n, :c].set(x)


if __name__ == "__main__":
    key = jax.random.PRNGKey(0)

    num_nodes = 64
    in_channels = 16
    hidden_channels = 32
    num_layers = 2
    num_edges = 256

    npad = _round_up(num_nodes, NPAD_MULT)

    key, kx, ke, kp = jax.random.split(key, 4)
    x = jax.random.normal(kx, (num_nodes, in_channels), jnp.float32)
    edge_index = jax.random.randint(ke, (2, num_edges), 0, num_nodes, jnp.int32)

    w_packed, b_packed = init_packed_params(kp, in_channels, hidden_channels, num_layers)
    adj = edge_index_to_dense_adj(edge_index, num_nodes, npad)
    x_pad = pad_features(x, npad)

    out = graphsage_forward(x_pad, adj, w_packed, b_packed,
                            num_nodes=num_nodes, hidden_channels=hidden_channels)
    out = jax.block_until_ready(out)

    assert out.shape == (num_nodes, hidden_channels)
    assert bool(jnp.all(jnp.isfinite(out)))
    print("KERNEL_OK")
</pallas_src>

<mosaic_0001>
module attributes {stable_mosaic.version = 11 : i64} {
  func.func @_fused_sage_kernel(%arg0: memref<128x128xbf16, #tpu.memory_space<vmem>>, %arg1: memref<128x128xf32, #tpu.memory_space<vmem>>, %arg2: memref<2x2x128x128xf32, #tpu.memory_space<vmem>>, %arg3: memref<2x1x128xf32, #tpu.memory_space<vmem>>, %arg4: memref<128x128xf32, #tpu.memory_space<vmem>>) attributes {dimension_semantics = [], scalar_prefetch = 0 : i64, scratch_operands = 0 : i64, tpu.core_type = #tpu.core_type<tc>} {
    %c0 = arith.constant 0 : index
    %c0_0 = arith.constant 0 : index
    %0 = vector.load %arg0[%c0, %c0_0] : memref<128x128xbf16, #tpu.memory_space<vmem>>, vector<128x128xbf16>
    %c0_1 = arith.constant 0 : index
    %c0_2 = arith.constant 0 : index
    %1 = vector.load %arg1[%c0_1, %c0_2] : memref<128x128xf32, #tpu.memory_space<vmem>>, vector<128x128xf32>
    %2 = arith.truncf %1 : vector<128x128xf32> to vector<128x128xbf16>
    %cst = arith.constant dense<0.000000e+00> : vector<128x128xf32>
    %3 = tpu.matmul %0, %2, %cst {dimension_numbers = #tpu.dot_dimension_numbers<[1], [0], [0], [1], [0, 0, 1, 1], [], []>} : vector<128x128xbf16>, vector<128x128xbf16>, vector<128x128xf32> -> vector<128x128xf32>
    %c0_3 = arith.constant 0 : index
    %c0_4 = arith.constant 0 : index
    %c0_5 = arith.constant 0 : index
    %c0_6 = arith.constant 0 : index
    %4 = vector.load %arg2[%c0_3, %c0_4, %c0_5, %c0_6] : memref<2x2x128x128xf32, #tpu.memory_space<vmem>>, vector<1x1x128x128xf32>
    %5 = vector.shape_cast %4 : vector<1x1x128x128xf32> to vector<128x128xf32>
    %cst_7 = arith.constant dense<0.000000e+00> : vector<128x128xf32>
    %6 = tpu.matmul %3, %5, %cst_7 {dimension_numbers = #tpu.dot_dimension_numbers<[1], [0], [0], [1], [0, 0, 1, 1], [], []>} : vector<128x128xf32>, vector<128x128xf32>, vector<128x128xf32> -> vector<128x128xf32>
    %c0_8 = arith.constant 0 : index
    %c1 = arith.constant 1 : index
    %c0_9 = arith.constant 0 : index
    %c0_10 = arith.constant 0 : index
    %7 = vector.load %arg2[%c0_8, %c1, %c0_9, %c0_10] : memref<2x2x128x128xf32, #tpu.memory_space<vmem>>, vector<1x1x128x128xf32>
    %8 = vector.shape_cast %7 : vector<1x1x128x128xf32> to vector<128x128xf32>
    %cst_11 = arith.constant dense<0.000000e+00> : vector<128x128xf32>
    %9 = tpu.matmul %1, %8, %cst_11 {dimension_numbers = #tpu.dot_dimension_numbers<[1], [0], [0], [1], [0, 0, 1, 1], [], []>} : vector<128x128xf32>, vector<128x128xf32>, vector<128x128xf32> -> vector<128x128xf32>
    %10 = arith.addf %6, %9 : vector<128x128xf32>
    %c0_12 = arith.constant 0 : index
    %c0_13 = arith.constant 0 : index
    %c0_14 = arith.constant 0 : index
    %11 = vector.load %arg3[%c0_12, %c0_13, %c0_14] : memref<2x1x128xf32, #tpu.memory_space<vmem>>, vector<1x1x128xf32>
    %12 = vector.shape_cast %11 : vector<1x1x128xf32> to vector<1x128xf32>
    %13 = vector.broadcast %12 : vector<1x128xf32> to vector<128x128xf32>
    %14 = arith.addf %10, %13 : vector<128x128xf32>
    %15 = arith.mulf %14, %14 : vector<128x128xf32>
    %cst_15 = arith.constant dense<0.000000e+00> : vector<128xf32>
    %16 = vector.multi_reduction <add>, %15, %cst_15 [1] : vector<128x128xf32> to vector<128xf32>
    %17 = vector.shape_cast %16 : vector<128xf32> to vector<128x1xf32>
    %cst_16 = arith.constant 1.000000e-24 : f32
    %18 = vector.broadcast %cst_16 : f32 to vector<128x1xf32>
    %19 = arith.maximumf %17, %18 : vector<128x1xf32>
    %20 = math.rsqrt %19 : vector<128x1xf32>
    %21 = vector.broadcast %20 : vector<128x1xf32> to vector<128x128xf32>
    %22 = arith.mulf %14, %21 : vector<128x128xf32>
    %cst_17 = arith.constant 0.000000e+00 : f32
    %23 = vector.broadcast %cst_17 : f32 to vector<128x128xf32>
    %24 = arith.cmpf ogt, %22, %23 : vector<128x128xf32>
    %cst_18 = arith.constant 0.000000e+00 : f32
    %25 = vector.broadcast %cst_18 : f32 to vector<128x128xf32>
    %26 = arith.minimumf %22, %25 : vector<128x128xf32>
    %27 = math.exp %26 : vector<128x128xf32>
    %cst_19 = arith.constant 1.000000e+00 : f32
    %28 = vector.broadcast %cst_19 : f32 to vector<128x128xf32>
    %29 = arith.subf %27, %28 : vector<128x128xf32>
    %30 = arith.select %24, %22, %29 : vector<128x128xi1>, vector<128x128xf32>
    %31 = arith.truncf %30 : vector<128x128xf32> to vector<128x128xbf16>
    %cst_20 = arith.constant dense<0.000000e+00> : vector<128x128xf32>
    %32 = tpu.matmul %0, %31, %cst_20 {dimension_numbers = #tpu.dot_dimension_numbers<[1], [0], [0], [1], [0, 0, 1, 1], [], []>} : vector<128x128xbf16>, vector<128x128xbf16>, vector<128x128xf32> -> vector<128x128xf32>
    %c1_21 = arith.constant 1 : index
    %c0_22 = arith.constant 0 : index
    %c0_23 = arith.constant 0 : index
    %c0_24 = arith.constant 0 : index
    %33 = vector.load %arg2[%c1_21, %c0_22, %c0_23, %c0_24] : memref<2x2x128x128xf32, #tpu.memory_space<vmem>>, vector<1x1x128x128xf32>
    %34 = vector.shape_cast %33 : vector<1x1x128x128xf32> to vector<128x128xf32>
    %cst_25 = arith.constant dense<0.000000e+00> : vector<128x128xf32>
    %35 = tpu.matmul %32, %34, %cst_25 {dimension_numbers = #tpu.dot_dimension_numbers<[1], [0], [0], [1], [0, 0, 1, 1], [], []>} : vector<128x128xf32>, vector<128x128xf32>, vector<128x128xf32> -> vector<128x128xf32>
    %c1_26 = arith.constant 1 : index
    %c1_27 = arith.constant 1 : index
    %c0_28 = arith.constant 0 : index
    %c0_29 = arith.constant 0 : index
    %36 = vector.load %arg2[%c1_26, %c1_27, %c0_28, %c0_29] : memref<2x2x128x128xf32, #tpu.memory_space<vmem>>, vector<1x1x128x128xf32>
    %37 = vector.shape_cast %36 : vector<1x1x128x128xf32> to vector<128x128xf32>
    %cst_30 = arith.constant dense<0.000000e+00> : vector<128x128xf32>
    %38 = tpu.matmul %30, %37, %cst_30 {dimension_numbers = #tpu.dot_dimension_numbers<[1], [0], [0], [1], [0, 0, 1, 1], [], []>} : vector<128x128xf32>, vector<128x128xf32>, vector<128x128xf32> -> vector<128x128xf32>
    %39 = arith.addf %35, %38 : vector<128x128xf32>
    %c1_31 = arith.constant 1 : index
    %c0_32 = arith.constant 0 : index
    %c0_33 = arith.constant 0 : index
    %40 = vector.load %arg3[%c1_31, %c0_32, %c0_33] : memref<2x1x128xf32, #tpu.memory_space<vmem>>, vector<1x1x128xf32>
    %41 = vector.shape_cast %40 : vector<1x1x128xf32> to vector<1x128xf32>
    %42 = vector.broadcast %41 : vector<1x128xf32> to vector<128x128xf32>
    %43 = arith.addf %39, %42 : vector<128x128xf32>
    %44 = arith.mulf %43, %43 : vector<128x128xf32>
    %cst_34 = arith.constant dense<0.000000e+00> : vector<128xf32>
    %45 = vector.multi_reduction <add>, %44, %cst_34 [1] : vector<128x128xf32> to vector<128xf32>
    %46 = vector.shape_cast %45 : vector<128xf32> to vector<128x1xf32>
    %cst_35 = arith.constant 1.000000e-24 : f32
    %47 = vector.broadcast %cst_35 : f32 to vector<128x1xf32>
    %48 = arith.maximumf %46, %47 : vector<128x1xf32>
    %49 = math.rsqrt %48 : vector<128x1xf32>
    %50 = vector.broadcast %49 : vector<128x1xf32> to vector<128x128xf32>
    %51 = arith.mulf %43, %50 : vector<128x128xf32>
    %cst_36 = arith.constant 0.000000e+00 : f32
    %52 = vector.broadcast %cst_36 : f32 to vector<128x128xf32>
    %53 = arith.cmpf ogt, %51, %52 : vector<128x128xf32>
    %cst_37 = arith.constant 0.000000e+00 : f32
    %54 = vector.broadcast %cst_37 : f32 to vector<128x128xf32>
    %55 = arith.minimumf %51, %54 : vector<128x128xf32>
    %56 = math.exp %55 : vector<128x128xf32>
    %cst_38 = arith.constant 1.000000e+00 : f32
    %57 = vector.broadcast %cst_38 : f32 to vector<128x128xf32>
    %58 = arith.subf %56, %57 : vector<128x128xf32>
    %59 = arith.select %53, %51, %58 : vector<128x128xi1>, vector<128x128xf32>
    %c0_39 = arith.constant 0 : index
    %c0_40 = arith.constant 0 : index
    %60 = vector.load %arg4[%c0_39, %c0_40] : memref<128x128xf32, #tpu.memory_space<vmem>>, vector<128x128xf32>
    tpu.vector_store %arg4[%c0_39, %c0_40], %59 {strides = array<i32>} : memref<128x128xf32, #tpu.memory_space<vmem>>, vector<128x128xf32>,
    return
  }
}

</mosaic_0001>

<llo_original>
// kernel: graphsage_forward.1
$region0: #{graphsage_forward.1}
  #allocation0 [shape = 'u32[]', space=smem, size = 0x4, offset = 0x4, fixed_abs, tag = 'smem constant byte address 0x4 - core index']
  #allocation1 [shape = 'u32[72,128]{1,0:T(1,128)}', space=vmem, size = 0x9000, scoped, tag = 'internal scratch']
  %s0 = inlined_call_operand.hbm [shape: bf16[128,128], index: 0, kind: input, shape index: {}]
  %s1 = inlined_call_operand.hbm [shape: f32[128,128], index: 1, kind: input, shape index: {}]
  %s2 = inlined_call_operand.hbm [shape: f32[2,2,128,128], index: 2, kind: input, shape index: {}]
  %s3 = inlined_call_operand.vmem [shape: f32[2,1,128], index: 3, kind: input, shape index: {}]
  %s4 = inlined_call_operand.vmem [shape: f32[128,128], index: 4, kind: output, shape index: {}]
  %s5 = sld [smem:[#allocation0]]
  $region38: #{graphsage_forward.1} parent=0
    _
  %s7 = ssub.s32 1, %s5
  %s8 = scalar_select 0, %s7, %s5
  $region1: #{graphsage_forward.1} parent=0
    #allocation2 [shape = 'u8[32768]{0}', space=vmem, size = 0x8000, scoped, tag = 'input window, operand 0, single buffered']
    #allocation3 [shape = 's32[1]{0}', space=sflag, size = 0x4, scoped, tag = 'scoped memory for graphsage_forward.1']
    #allocation4 [shape = 'u8[65536]{0}', space=vmem, size = 0x10000, scoped, tag = 'input window, operand 1, single buffered']
    #allocation5 [shape = 's32[1]{0}', space=sflag, size = 0x4, scoped, tag = 'scoped memory for graphsage_forward.1']
    #allocation6 [shape = 'u8[262144]{0}', space=vmem, size = 0x40000, scoped, tag = 'input window, operand 2, single buffered']
    %9 = vsyncpa [#allocation3], 0
    %10 = vsyncpa [#allocation5], 0
    // Predicated region
    $region2: #{graphsage_forward.1} parent=1 // pred_check
      _
    $region3: #{graphsage_forward.1} parent=1 // pred_check_branch
      %12 = sbr.rel (0) target = $region5
    $region4: #{graphsage_forward.1} parent=1 // pred_region
      %14 = vsyncadd [#allocation3], 0
      %s15 = sshll.u32 %s0, 4
      %s16 = int_to_ptr.hbm [resolvable:$true] %s15
      %s17 = sshll.u32 [#allocation2], 4
      %s18 = int_to_ptr.vmem [resolvable:$true] %s17
      %23 = dma.hbm_to_vmem [thread:$0]  %s16, 1024, %s18, [#allocation3], 64, 64, 4
    $region5: #{graphsage_forward.1} parent=1 // pred_fallthru
      _
    // Predicated region
    $region6: #{graphsage_forward.1} parent=1 // pred_check
      _
    $region7: #{graphsage_forward.1} parent=1 // pred_check_branch
      %25 = sbr.rel (0) target = $region9
    $region8: #{graphsage_forward.1} parent=1 // pred_region
      %27 = vsyncadd [#allocation5], 0
      %s28 = sshll.u32 %s1, 4
      %s29 = int_to_ptr.hbm [resolvable:$true] %s28
      %s30 = sshll.u32 [#allocation4], 4
      %s31 = int_to_ptr.vmem [resolvable:$true] %s30
      %36 = dma.hbm_to_vmem [thread:$0]  %s29, 2048, %s31, [#allocation5], 128, 128, 8
    $region9: #{graphsage_forward.1} parent=1 // pred_fallthru
      _
    // Predicated region
    $region10: #{graphsage_forward.1} parent=1 // pred_check
      _
    $region11: #{graphsage_forward.1} parent=1 // pred_check_branch
      %38 = sbr.rel (0) target = $region13
    $region12: #{graphsage_forward.1} parent=1 // pred_region
      %40 = vsyncadd [#allocation5], 0
      %s41 = sshll.u32 %s2, 4
      %s42 = int_to_ptr.hbm [resolvable:$true] %s41
      %s43 = sshll.u32 [#allocation6], 4
      %s44 = int_to_ptr.vmem [resolvable:$true] %s43
      %49 = dma.hbm_to_vmem [thread:$0]  %s42, 8192, %s44, [#allocation5], 128, 128, 8
    $region13: #{graphsage_forward.1} parent=1 // pred_fallthru
      _
    // Predicated region
    $region14: #{graphsage_forward.1} parent=1 // pred_check
      _
    $region15: #{graphsage_forward.1} parent=1 // pred_check_branch
      %51 = sbr.rel (0) target = $region17
    $region16: #{graphsage_forward.1} parent=1 // pred_region
      _
    $region17: #{graphsage_forward.1} parent=1 // pred_fallthru
      _
    // Predicated region
    $region18: #{graphsage_forward.1} parent=1 // pred_check
      _
    $region19: #{graphsage_forward.1} parent=1 // pred_check_branch
      %53 = sbr.rel (0) target = $region21
    $region20: #{graphsage_forward.1} parent=1 // pred_region
      %55 = dma.done [#allocation3], 1024
    $region21: #{graphsage_forward.1} parent=1 // pred_fallthru
      _
    // Predicated region
    $region22: #{graphsage_forward.1} parent=1 // pred_check
      _
    $region23: #{graphsage_forward.1} parent=1 // pred_check_branch
      %57 = sbr.rel (0) target = $region25
    $region24: #{graphsage_forward.1} parent=1 // pred_region
      %59 = dma.done [#allocation5], 2048
    $region25: #{graphsage_forward.1} parent=1 // pred_fallthru
      _
    // Predicated region
    $region26: #{graphsage_forward.1} parent=1 // pred_check
      _
    $region27: #{graphsage_forward.1} parent=1 // pred_check_branch
      %61 = sbr.rel (0) target = $region29
    $region28: #{graphsage_forward.1} parent=1 // pred_region
      %63 = dma.done [#allocation5], 8192
    $region29: #{graphsage_forward.1} parent=1 // pred_fallthru
      _
    %v64 = vld [vmem:[#allocation2] sm:$0xf]
    %v65 = vld [vmem:[#allocation2 + $0x4] sm:$0xf]
    %v66 = vld [vmem:[#allocation2 + $0x8] sm:$0xf]
    %v67 = vld [vmem:[#allocation2 + $0xc] sm:$0xf]
    %v68 = vld [vmem:[#allocation2 + $0x10] sm:$0xf]
    %v69 = vld [vmem:[#allocation2 + $0x14] sm:$0xf]
    %v70 = vld [vmem:[#allocation2 + $0x18] sm:$0xf]
    %v71 = vld [vmem:[#allocation2 + $0x1c] sm:$0xf]
    %v72 = vld [vmem:[#allocation2 + $0x20] sm:$0xf]
    %v73 = vld [vmem:[#allocation2 + $0x24] sm:$0xf]
    %v74 = vld [vmem:[#allocation2 + $0x28] sm:$0xf]
    %v75 = vld [vmem:[#allocation2 + $0x2c] sm:$0xf]
    %v76 = vld [vmem:[#allocation2 + $0x30] sm:$0xf]
    %v77 = vld [vmem:[#allocation2 + $0x34] sm:$0xf]
    %v78 = vld [vmem:[#allocation2 + $0x38] sm:$0xf]
    %v79 = vld [vmem:[#allocation2 + $0x3c] sm:$0xf]
    %v80 = vld [vmem:[#allocation4] sm:$0xff]
    %v81 = vld [vmem:[#allocation4 + $0x8] sm:$0xff]
    %v82 = vld [vmem:[#allocation4 + $0x10] sm:$0xff]
    %v83 = vld [vmem:[#allocation4 + $0x18] sm:$0xff]
    %v84 = vld [vmem:[#allocation4 + $0x20] sm:$0xff]
    %v85 = vld [vmem:[#allocation4 + $0x28] sm:$0xff]
    %v86 = vld [vmem:[#allocation4 + $0x30] sm:$0xff]
    %v87 = vld [vmem:[#allocation4 + $0x38] sm:$0xff]
    %v88 = vld [vmem:[#allocation4 + $0x40] sm:$0xff]
    %v89 = vld [vmem:[#allocation4 + $0x48] sm:$0xff]
    %v90 = vld [vmem:[#allocation4 + $0x50] sm:$0xff]
    %v91 = vld [vmem:[#allocation4 + $0x58] sm:$0xff]
    %v92 = vld [vmem:[#allocation4 + $0x60] sm:$0xff]
    %v93 = vld [vmem:[#allocation4 + $0x68] sm:$0xff]
    %v94 = vld [vmem:[#allocation4 + $0x70] sm:$0xff]
    %v95 = vld [vmem:[#allocation4 + $0x78] sm:$0xff]
    %v96 = vpack.c.bf16 %v81, %v80
    %v97 = vpack.c.bf16 %v83, %v82
    %v98 = vpack.c.bf16 %v85, %v84
    %v99 = vpack.c.bf16 %v87, %v86
    %v100 = vpack.c.bf16 %v89, %v88
    %v101 = vpack.c.bf16 %v91, %v90
    %v102 = vpack.c.bf16 %v93, %v92
    %v103 = vpack.c.bf16 %v95, %v94
    %v120 = vunpack.c.l.b16 %v64
    %v121 = vunpack.c.l.b16 %v65
    %v122 = vunpack.c.l.b16 %v66
    %v123 = vunpack.c.l.b16 %v67
    %v124 = vunpack.c.l.b16 %v68
    %v125 = vunpack.c.l.b16 %v69
    %v126 = vunpack.c.l.b16 %v70
    %v127 = vunpack.c.l.b16 %v71
    %v128 = vunpack.c.l.b16 %v72
    %v129 = vunpack.c.l.b16 %v73
    %v130 = vunpack.c.l.b16 %v74
    %v131 = vunpack.c.l.b16 %v75
    %v132 = vunpack.c.l.b16 %v76
    %v133 = vunpack.c.l.b16 %v77
    %v134 = vunpack.c.l.b16 %v78
    %v135 = vunpack.c.l.b16 %v79
    %v136 = vpack.c.b16 %v121, %v120
    %v137 = vpack.c.b16 %v123, %v122
    %v138 = vpack.c.b16 %v125, %v124
    %v139 = vpack.c.b16 %v127, %v126
    %v140 = vpack.c.b16 %v129, %v128
    %v141 = vpack.c.b16 %v131, %v130
    %v142 = vpack.c.b16 %v133, %v132
    %v143 = vpack.c.b16 %v135, %v134
    %152 = vmatpush.bf16.msra.mxu0 %v103
    %153 = vmatpush.bf16.msra.mxu0 %v102
    %154 = vmatpush.bf16.msra.mxu0 %v101
    %155 = vmatpush.bf16.msra.mxu0 %v100
    %156 = vmatpush.bf16.msra.mxu0 %v99
    %157 = vmatpush.bf16.msra.mxu0 %v98
    %158 = vmatpush.bf16.msra.mxu0 %v97
    %159 = vmatpush.bf16.msra.mxu0 %v96
    %160 = vmatmul.bf16.gmra.mxu0 %v136
    %v161 = vpop.f32.mrf.mxu0
    %v162 = vadd.f32 0.0, %v161
    %v163 = vpop.f32.mrf.mxu0
    %v164 = vadd.f32 0.0, %v163
    %165 = vmatmul.bf16.gmra.mxu0 %v137
    %v166 = vpop.f32.mrf.mxu0
    %v167 = vadd.f32 0.0, %v166
    %v168 = vpop.f32.mrf.mxu0
    %v169 = vadd.f32 0.0, %v168
    %170 = vmatmul.bf16.gmra.mxu0 %v138
    %v171 = vpop.f32.mrf.mxu0
    %v172 = vadd.f32 0.0, %v171
    %v173 = vpop.f32.mrf.mxu0
    %v174 = vadd.f32 0.0, %v173
    %175 = vmatmul.bf16.gmra.mxu0 %v139
    %v176 = vpop.f32.mrf.mxu0
    %v177 = vadd.f32 0.0, %v176
    %v178 = vpop.f32.mrf.mxu0
    %v179 = vadd.f32 0.0, %v178
    %180 = vmatmul.bf16.gmra.mxu0 %v140
    %v181 = vpop.f32.mrf.mxu0
    %v182 = vadd.f32 0.0, %v181
    %v183 = vpop.f32.mrf.mxu0
    %v184 = vadd.f32 0.0, %v183
    %185 = vmatmul.bf16.gmra.mxu0 %v141
    %v186 = vpop.f32.mrf.mxu0
    %v187 = vadd.f32 0.0, %v186
    %v188 = vpop.f32.mrf.mxu0
    %v189 = vadd.f32 0.0, %v188
    %190 = vmatmul.bf16.gmra.mxu0 %v142
    %v191 = vpop.f32.mrf.mxu0
    %v192 = vadd.f32 0.0, %v191
    %v193 = vpop.f32.mrf.mxu0
    %v194 = vadd.f32 0.0, %v193
    %195 = vmatmul.bf16.gmra.mxu0 %v143
    %v196 = vpop.f32.mrf.mxu0
    %v197 = vadd.f32 0.0, %v196
    %v198 = vpop.f32.mrf.mxu0
    %v199 = vadd.f32 0.0, %v198
    %200 = vdwg.mxu0
    %v201 = vld [vmem:[#allocation6] sm:$0xff]
    %v202 = vld [vmem:[#allocation6 + $0x8] sm:$0xff]
    %v203 = vld [vmem:[#allocation6 + $0x10] sm:$0xff]
    %v204 = vld [vmem:[#allocation6 + $0x18] sm:$0xff]
    %v205 = vld [vmem:[#allocation6 + $0x20] sm:$0xff]
    %v206 = vld [vmem:[#allocation6 + $0x28] sm:$0xff]
    %v207 = vld [vmem:[#allocation6 + $0x30] sm:$0xff]
    %v208 = vld [vmem:[#allocation6 + $0x38] sm:$0xff]
    %v209 = vld [vmem:[#allocation6 + $0x40] sm:$0xff]
    %v210 = vld [vmem:[#allocation6 + $0x48] sm:$0xff]
    %v211 = vld [vmem:[#allocation6 + $0x50] sm:$0xff]
    %v212 = vld [vmem:[#allocation6 + $0x58] sm:$0xff]
    %v213 = vld [vmem:[#allocation6 + $0x60] sm:$0xff]
    %v214 = vld [vmem:[#allocation6 + $0x68] sm:$0xff]
    %v215 = vld [vmem:[#allocation6 + $0x70] sm:$0xff]
    %v216 = vld [vmem:[#allocation6 + $0x78] sm:$0xff]
    %s217 = scalar_lea.vmem [#allocation6], 128
    %v218 = vld [vmem:[%s217] sm:$0xff]
    %v219 = vld [vmem:[%s217 + $0x8] sm:$0xff]
    %v220 = vld [vmem:[%s217 + $0x10] sm:$0xff]
    %v221 = vld [vmem:[%s217 + $0x18] sm:$0xff]
    %v222 = vld [vmem:[%s217 + $0x20] sm:$0xff]
    %v223 = vld [vmem:[%s217 + $0x28] sm:$0xff]
    %v224 = vld [vmem:[%s217 + $0x30] sm:$0xff]
    %v225 = vld [vmem:[%s217 + $0x38] sm:$0xff]
    %v226 = vld [vmem:[%s217 + $0x40] sm:$0xff]
    %v227 = vld [vmem:[%s217 + $0x48] sm:$0xff]
    %v228 = vld [vmem:[%s217 + $0x50] sm:$0xff]
    %v229 = vld [vmem:[%s217 + $0x58] sm:$0xff]
    %v230 = vld [vmem:[%s217 + $0x60] sm:$0xff]
    %v231 = vld [vmem:[%s217 + $0x68] sm:$0xff]
    %v232 = vld [vmem:[%s217 + $0x70] sm:$0xff]
    %v233 = vld [vmem:[%s217 + $0x78] sm:$0xff]
    %234 = vmatpush.msra.mxu0 %v233
    %235 = vmatpush.msra.mxu0 %v232
    %236 = vmatpush.msra.mxu0 %v231
    %237 = vmatpush.msra.mxu0 %v230
    %238 = vmatpush.msra.mxu0 %v229
    %239 = vmatpush.msra.mxu0 %v228
    %240 = vmatpush.msra.mxu0 %v227
    %241 = vmatpush.msra.mxu0 %v226
    %242 = vmatpush.msra.mxu0 %v225
    %243 = vmatpush.msra.mxu0 %v224
    %244 = vmatpush.msra.mxu0 %v223
    %245 = vmatpush.msra.mxu0 %v222
    %246 = vmatpush.msra.mxu0 %v221
    %247 = vmatpush.msra.mxu0 %v220
    %248 = vmatpush.msra.mxu0 %v219
    %249 = vmatpush.msra.mxu0 %v218
    %250 = vmatmul.f32.gmra.mxu0 %v80
    %v251 = vpop.f32.mrf.mxu0
    %v252 = vadd.f32 0.0, %v251
    %253 = vmatmul.f32.gmra.mxu0 %v81
    %v254 = vpop.f32.mrf.mxu0
    %v255 = vadd.f32 0.0, %v254
    %256 = vmatmul.f32.gmra.mxu0 %v82
    %v257 = vpop.f32.mrf.mxu0
    %v258 = vadd.f32 0.0, %v257
    %259 = vmatmul.f32.gmra.mxu0 %v83
    %v260 = vpop.f32.mrf.mxu0
    %v261 = vadd.f32 0.0, %v260
    %262 = vmatmul.f32.gmra.mxu0 %v84
    %v263 = vpop.f32.mrf.mxu0
    %v264 = vadd.f32 0.0, %v263
    %265 = vmatmul.f32.gmra.mxu0 %v85
    %v266 = vpop.f32.mrf.mxu0
    %v267 = vadd.f32 0.0, %v266
    %268 = vmatmul.f32.gmra.mxu0 %v86
    %v269 = vpop.f32.mrf.mxu0
    %v270 = vadd.f32 0.0, %v269
    %271 = vmatmul.f32.gmra.mxu0 %v87
    %v272 = vpop.f32.mrf.mxu0
    %v273 = vadd.f32 0.0, %v272
    %274 = vmatmul.f32.gmra.mxu0 %v88
    %v275 = vpop.f32.mrf.mxu0
    %v276 = vadd.f32 0.0, %v275
    %277 = vmatmul.f32.gmra.mxu0 %v89
    %v278 = vpop.f32.mrf.mxu0
    %v279 = vadd.f32 0.0, %v278
    %280 = vmatmul.f32.gmra.mxu0 %v90
    %v281 = vpop.f32.mrf.mxu0
    %v282 = vadd.f32 0.0, %v281
    %283 = vmatmul.f32.gmra.mxu0 %v91
    %v284 = vpop.f32.mrf.mxu0
    %v285 = vadd.f32 0.0, %v284
    %286 = vmatmul.f32.gmra.mxu0 %v92
    %v287 = vpop.f32.mrf.mxu0
    %v288 = vadd.f32 0.0, %v287
    %289 = vmatmul.f32.gmra.mxu0 %v93
    %v290 = vpop.f32.mrf.mxu0
    %v291 = vadd.f32 0.0, %v290
    %292 = vmatmul.f32.gmra.mxu0 %v94
    %v293 = vpop.f32.mrf.mxu0
    %v294 = vadd.f32 0.0, %v293
    %295 = vmatmul.f32.gmra.mxu0 %v95
    %v296 = vpop.f32.mrf.mxu0
    %v297 = vadd.f32 0.0, %v296
    %298 = vdwg.mxu0
    %299 = vmatpush.msra.mxu0 %v216
    %300 = vmatpush.msra.mxu0 %v215
    %301 = vmatpush.msra.mxu0 %v214
    %302 = vmatpush.msra.mxu0 %v213
    %303 = vmatpush.msra.mxu0 %v212
    %304 = vmatpush.msra.mxu0 %v211
    %305 = vmatpush.msra.mxu0 %v210
    %306 = vmatpush.msra.mxu0 %v209
    %307 = vmatpush.msra.mxu0 %v208
    %308 = vmatpush.msra.mxu0 %v207
    %309 = vmatpush.msra.mxu0 %v206
    %310 = vmatpush.msra.mxu0 %v205
    %311 = vmatpush.msra.mxu0 %v204
    %312 = vmatpush.msra.mxu0 %v203
    %313 = vmatpush.msra.mxu0 %v202
    %314 = vmatpush.msra.mxu0 %v201
    %315 = vmatmul.f32.gmra.mxu0 %v162
    %v316 = vpop.f32.mrf.mxu0
    %v317 = vadd.f32 %v252, %v316
    %318 = vmatmul.f32.gmra.mxu0 %v164
    %v319 = vpop.f32.mrf.mxu0
    %v320 = vadd.f32 %v255, %v319
    %321 = vmatmul.f32.gmra.mxu0 %v167
    %v322 = vpop.f32.mrf.mxu0
    %v323 = vadd.f32 %v258, %v322
    %324 = vmatmul.f32.gmra.mxu0 %v169
    %v325 = vpop.f32.mrf.mxu0
    %v326 = vadd.f32 %v261, %v325
    %327 = vmatmul.f32.gmra.mxu0 %v172
    %v328 = vpop.f32.mrf.mxu0
    %v329 = vadd.f32 %v264, %v328
    %330 = vmatmul.f32.gmra.mxu0 %v174
    %v331 = vpop.f32.mrf.mxu0
    %v332 = vadd.f32 %v267, %v331
    %333 = vmatmul.f32.gmra.mxu0 %v177
    %v334 = vpop.f32.mrf.mxu0
    %v335 = vadd.f32 %v270, %v334
    %336 = vmatmul.f32.gmra.mxu0 %v179
    %v337 = vpop.f32.mrf.mxu0
    %v338 = vadd.f32 %v273, %v337
    %339 = vmatmul.f32.gmra.mxu0 %v182
    %v340 = vpop.f32.mrf.mxu0
    %v341 = vadd.f32 %v276, %v340
    %342 = vmatmul.f32.gmra.mxu0 %v184
    %v343 = vpop.f32.mrf.mxu0
    %v344 = vadd.f32 %v279, %v343
    %345 = vmatmul.f32.gmra.mxu0 %v187
    %v346 = vpop.f32.mrf.mxu0
    %v347 = vadd.f32 %v282, %v346
    %348 = vmatmul.f32.gmra.mxu0 %v189
    %v349 = vpop.f32.mrf.mxu0
    %v350 = vadd.f32 %v285, %v349
    %351 = vmatmul.f32.gmra.mxu0 %v192
    %v352 = vpop.f32.mrf.mxu0
    %v353 = vadd.f32 %v288, %v352
    %354 = vmatmul.f32.gmra.mxu0 %v194
    %v355 = vpop.f32.mrf.mxu0
    %v356 = vadd.f32 %v291, %v355
    %357 = vmatmul.f32.gmra.mxu0 %v197
    %v358 = vpop.f32.mrf.mxu0
    %v359 = vadd.f32 %v294, %v358
    %360 = vmatmul.f32.gmra.mxu0 %v199
    %v361 = vpop.f32.mrf.mxu0
    %v362 = vadd.f32 %v297, %v361
    %363 = vdwg.mxu0
    %v364 = vld [vmem:[%s3] sm:$0x1]
    %v366 = vperm.slane %v364, 0
    %v368 = vadd.f32 %v317, %v366
    %v369 = vadd.f32 %v320, %v366
    %v370 = vadd.f32 %v323, %v366
    %v371 = vadd.f32 %v326, %v366
    %v372 = vadd.f32 %v329, %v366
    %v373 = vadd.f32 %v332, %v366
    %v374 = vadd.f32 %v335, %v366
    %v375 = vadd.f32 %v338, %v366
    %v376 = vadd.f32 %v341, %v366
    %v377 = vadd.f32 %v344, %v366
    %v378 = vadd.f32 %v347, %v366
    %v379 = vadd.f32 %v350, %v366
    %v380 = vadd.f32 %v353, %v366
    %v381 = vadd.f32 %v356, %v366
    %v382 = vadd.f32 %v359, %v366
    %v383 = vadd.f32 %v362, %v366
    %v384 = vmul.f32 %v368, %v368
    %v385 = vmul.f32 %v369, %v369
    %v386 = vmul.f32 %v370, %v370
    %v387 = vmul.f32 %v371, %v371
    %v388 = vmul.f32 %v372, %v372
    %v389 = vmul.f32 %v373, %v373
    %v390 = vmul.f32 %v374, %v374
    %v391 = vmul.f32 %v375, %v375
    %v392 = vmul.f32 %v376, %v376
    %v393 = vmul.f32 %v377, %v377
    %v394 = vmul.f32 %v378, %v378
    %v395 = vmul.f32 %v379, %v379
    %v396 = vmul.f32 %v380, %v380
    %v397 = vmul.f32 %v381, %v381
    %v398 = vmul.f32 %v382, %v382
    %v399 = vmul.f32 %v383, %v383
    %400 = vadd.xlane.f32.xlu0 %v384
    %v401 = vpop.xlane.xlu0 %400
    %402 = vadd.xlane.f32.xlu0 %v385
    %v403 = vpop.xlane.xlu0 %402
    %404 = vadd.xlane.f32.xlu0 %v386
    %v405 = vpop.xlane.xlu0 %404
    %406 = vadd.xlane.f32.xlu0 %v387
    %v407 = vpop.xlane.xlu0 %406
    %408 = vadd.xlane.f32.xlu0 %v388
    %v409 = vpop.xlane.xlu0 %408
    %410 = vadd.xlane.f32.xlu0 %v389
    %v411 = vpop.xlane.xlu0 %410
    %412 = vadd.xlane.f32.xlu0 %v390
    %v413 = vpop.xlane.xlu0 %412
    %414 = vadd.xlane.f32.xlu0 %v391
    %v415 = vpop.xlane.xlu0 %414
    %416 = vadd.xlane.f32.xlu0 %v392
    %v417 = vpop.xlane.xlu0 %416
    %418 = vadd.xlane.f32.xlu0 %v393
    %v419 = vpop.xlane.xlu0 %418
    %420 = vadd.xlane.f32.xlu0 %v394
    %v421 = vpop.xlane.xlu0 %420
    %422 = vadd.xlane.f32.xlu0 %v395
    %v423 = vpop.xlane.xlu0 %422
    %424 = vadd.xlane.f32.xlu0 %v396
    %v425 = vpop.xlane.xlu0 %424
    %426 = vadd.xlane.f32.xlu0 %v397
    %v427 = vpop.xlane.xlu0 %426
    %428 = vadd.xlane.f32.xlu0 %v398
    %v429 = vpop.xlane.xlu0 %428
    %430 = vadd.xlane.f32.xlu0 %v399
    %v431 = vpop.xlane.xlu0 %430
    %v432 = vmax.f32 %v401, 1e-24
    %v433 = vmax.f32 %v403, 1e-24
    %v434 = vmax.f32 %v405, 1e-24
    %v435 = vmax.f32 %v407, 1e-24
    %v436 = vmax.f32 %v409, 1e-24
    %v437 = vmax.f32 %v411, 1e-24
    %v438 = vmax.f32 %v413, 1e-24
    %v439 = vmax.f32 %v415, 1e-24
    %v440 = vmax.f32 %v417, 1e-24
    %v441 = vmax.f32 %v419, 1e-24
    %v442 = vmax.f32 %v421, 1e-24
    %v443 = vmax.f32 %v423, 1e-24
    %v444 = vmax.f32 %v425, 1e-24
    %v445 = vmax.f32 %v427, 1e-24
    %v446 = vmax.f32 %v429, 1e-24
    %v447 = vmax.f32 %v431, 1e-24
    %v448 = vrsqrt.pop %v432
    %v449 = vmul.f32 %v448, %v432
    %v450 = vmul.f32 %v449, %v448
    %v451 = vmul.f32 0.5, %v450
    %v452 = vsub.f32 1.5, %v451
    %v453 = vmul.f32 %v448, %v452
    %vm454 = vweird.f32 %v432
    %vm455 = vweird.f32 %v448
    %vm456 = vmor %vm454, %vm455
    %v457 = vsel %vm456, %v448, %v453
    %v458 = vrsqrt.pop %v433
    %v459 = vmul.f32 %v458, %v433
    %v460 = vmul.f32 %v459, %v458
    %v461 = vmul.f32 0.5, %v460
    %v462 = vsub.f32 1.5, %v461
    %v463 = vmul.f32 %v458, %v462
    %vm464 = vweird.f32 %v433
    %vm465 = vweird.f32 %v458
    %vm466 = vmor %vm464, %vm465
    %v467 = vsel %vm466, %v458, %v463
    %v468 = vrsqrt.pop %v434
    %v469 = vmul.f32 %v468, %v434
    %v470 = vmul.f32 %v469, %v468
    %v471 = vmul.f32 0.5, %v470
    %v472 = vsub.f32 1.5, %v471
    %v473 = vmul.f32 %v468, %v472
    %vm474 = vweird.f32 %v434
    %vm475 = vweird.f32 %v468
    %vm476 = vmor %vm474, %vm475
    %v477 = vsel %vm476, %v468, %v473
    %v478 = vrsqrt.pop %v435
    %v479 = vmul.f32 %v478, %v435
    %v480 = vmul.f32 %v479, %v478
    %v481 = vmul.f32 0.5, %v480
    %v482 = vsub.f32 1.5, %v481
    %v483 = vmul.f32 %v478, %v482
    %vm484 = vweird.f32 %v435
    %vm485 = vweird.f32 %v478
    %vm486 = vmor %vm484, %vm485
    %v487 = vsel %vm486, %v478, %v483
    %v488 = vrsqrt.pop %v436
    %v489 = vmul.f32 %v488, %v436
    %v490 = vmul.f32 %v489, %v488
    %v491 = vmul.f32 0.5, %v490
    %v492 = vsub.f32 1.5, %v491
    %v493 = vmul.f32 %v488, %v492
    %vm494 = vweird.f32 %v436
    %vm495 = vweird.f32 %v488
    %vm496 = vmor %vm494, %vm495
    %v497 = vsel %vm496, %v488, %v493
    %v498 = vrsqrt.pop %v437
    %v499 = vmul.f32 %v498, %v437
    %v500 = vmul.f32 %v499, %v498
    %v501 = vmul.f32 0.5, %v500
    %v502 = vsub.f32 1.5, %v501
    %v503 = vmul.f32 %v498, %v502
    %vm504 = vweird.f32 %v437
    %vm505 = vweird.f32 %v498
    %vm506 = vmor %vm504, %vm505
    %v507 = vsel %vm506, %v498, %v503
    %v508 = vrsqrt.pop %v438
    %v509 = vmul.f32 %v508, %v438
    %v510 = vmul.f32 %v509, %v508
    %v511 = vmul.f32 0.5, %v510
    %v512 = vsub.f32 1.5, %v511
    %v513 = vmul.f32 %v508, %v512
    %vm514 = vweird.f32 %v438
    %vm515 = vweird.f32 %v508
    %vm516 = vmor %vm514, %vm515
    %v517 = vsel %vm516, %v508, %v513
    %v518 = vrsqrt.pop %v439
    %v519 = vmul.f32 %v518, %v439
    %v520 = vmul.f32 %v519, %v518
    %v521 = vmul.f32 0.5, %v520
    %v522 = vsub.f32 1.5, %v521
    %v523 = vmul.f32 %v518, %v522
    %vm524 = vweird.f32 %v439
    %vm525 = vweird.f32 %v518
    %vm526 = vmor %vm524, %vm525
    %v527 = vsel %vm526, %v518, %v523
    %v528 = vrsqrt.pop %v440
    %v529 = vmul.f32 %v528, %v440
    %v530 = vmul.f32 %v529, %v528
    %v531 = vmul.f32 0.5, %v530
    %v532 = vsub.f32 1.5, %v531
    %v533 = vmul.f32 %v528, %v532
    %vm534 = vweird.f32 %v440
    %vm535 = vweird.f32 %v528
    %vm536 = vmor %vm534, %vm535
    %v537 = vsel %vm536, %v528, %v533
    %v538 = vrsqrt.pop %v441
    %v539 = vmul.f32 %v538, %v441
    %v540 = vmul.f32 %v539, %v538
    %v541 = vmul.f32 0.5, %v540
    %v542 = vsub.f32 1.5, %v541
    %v543 = vmul.f32 %v538, %v542
    %vm544 = vweird.f32 %v441
    %vm545 = vweird.f32 %v538
    %vm546 = vmor %vm544, %vm545
    %v547 = vsel %vm546, %v538, %v543
    %v548 = vrsqrt.pop %v442
    %v549 = vmul.f32 %v548, %v442
    %v550 = vmul.f32 %v549, %v548
    %v551 = vmul.f32 0.5, %v550
    %v552 = vsub.f32 1.5, %v551
    %v553 = vmul.f32 %v548, %v552
    %vm554 = vweird.f32 %v442
    %vm555 = vweird.f32 %v548
    %vm556 = vmor %vm554, %vm555
    %v557 = vsel %vm556, %v548, %v553
    %v558 = vrsqrt.pop %v443
    %v559 = vmul.f32 %v558, %v443
    %v560 = vmul.f32 %v559, %v558
    %v561 = vmul.f32 0.5, %v560
    %v562 = vsub.f32 1.5, %v561
    %v563 = vmul.f32 %v558, %v562
    %vm564 = vweird.f32 %v443
    %vm565 = vweird.f32 %v558
    %vm566 = vmor %vm564, %vm565
    %v567 = vsel %vm566, %v558, %v563
    %v568 = vrsqrt.pop %v444
    %v569 = vmul.f32 %v568, %v444
    %v570 = vmul.f32 %v569, %v568
    %v571 = vmul.f32 0.5, %v570
    %v572 = vsub.f32 1.5, %v571
    %v573 = vmul.f32 %v568, %v572
    %vm574 = vweird.f32 %v444
    %vm575 = vweird.f32 %v568
    %vm576 = vmor %vm574, %vm575
    %v577 = vsel %vm576, %v568, %v573
    %v578 = vrsqrt.pop %v445
    %v579 = vmul.f32 %v578, %v445
    %v580 = vmul.f32 %v579, %v578
    %v581 = vmul.f32 0.5, %v580
    %v582 = vsub.f32 1.5, %v581
    %v583 = vmul.f32 %v578, %v582
    %vm584 = vweird.f32 %v445
    %vm585 = vweird.f32 %v578
    %vm586 = vmor %vm584, %vm585
    %v587 = vsel %vm586, %v578, %v583
    %v588 = vrsqrt.pop %v446
    %v589 = vmul.f32 %v588, %v446
    %v590 = vmul.f32 %v589, %v588
    %v591 = vmul.f32 0.5, %v590
    %v592 = vsub.f32 1.5, %v591
    %v593 = vmul.f32 %v588, %v592
    %vm594 = vweird.f32 %v446
    %vm595 = vweird.f32 %v588
    %vm596 = vmor %vm594, %vm595
    %v597 = vsel %vm596, %v588, %v593
    %v598 = vrsqrt.pop %v447
    %v599 = vmul.f32 %v598, %v447
    %v600 = vmul.f32 %v599, %v598
    %v601 = vmul.f32 0.5, %v600
    %v602 = vsub.f32 1.5, %v601
    %v603 = vmul.f32 %v598, %v602
    %vm604 = vweird.f32 %v447
    %vm605 = vweird.f32 %v598
    %vm606 = vmor %vm604, %vm605
    %v607 = vsel %vm606, %v598, %v603
    %v608 = vmul.f32 %v368, %v457
    %v609 = vmul.f32 %v369, %v467
    %v610 = vmul.f32 %v370, %v477
    %v611 = vmul.f32 %v371, %v487
    %v612 = vmul.f32 %v372, %v497
    %v613 = vmul.f32 %v373, %v507
    %v614 = vmul.f32 %v374, %v517
    %v615 = vmul.f32 %v375, %v527
    %v616 = vmul.f32 %v376, %v537
    %v617 = vmul.f32 %v377, %v547
    %v618 = vmul.f32 %v378, %v557
    %v619 = vmul.f32 %v379, %v567
    %v620 = vmul.f32 %v380, %v577
    %v621 = vmul.f32 %v381, %v587
    %v622 = vmul.f32 %v382, %v597
    %v623 = vmul.f32 %v383, %v607
    %vm624 = vcmp.gt.f32.partialorder %v608, 0.0
    %vm625 = vcmp.gt.f32.partialorder %v609, 0.0
    %vm626 = vcmp.gt.f32.partialorder %v610, 0.0
    %vm627 = vcmp.gt.f32.partialorder %v611, 0.0
    %vm628 = vcmp.gt.f32.partialorder %v612, 0.0
    %vm629 = vcmp.gt.f32.partialorder %v613, 0.0
    %vm630 = vcmp.gt.f32.partialorder %v614, 0.0
    %vm631 = vcmp.gt.f32.partialorder %v615, 0.0
    %vm632 = vcmp.gt.f32.partialorder %v616, 0.0
    %vm633 = vcmp.gt.f32.partialorder %v617, 0.0
    %vm634 = vcmp.gt.f32.partialorder %v618, 0.0
    %vm635 = vcmp.gt.f32.partialorder %v619, 0.0
    %vm636 = vcmp.gt.f32.partialorder %v620, 0.0
    %vm637 = vcmp.gt.f32.partialorder %v621, 0.0
    %vm638 = vcmp.gt.f32.partialorder %v622, 0.0
    %vm639 = vcmp.gt.f32.partialorder %v623, 0.0
    %v640 = vmin.f32 %v608, 0.0
    %v641 = vmin.f32 %v609, 0.0
    %v642 = vmin.f32 %v610, 0.0
    %v643 = vmin.f32 %v611, 0.0
    %v644 = vmin.f32 %v612, 0.0
    %v645 = vmin.f32 %v613, 0.0
    %v646 = vmin.f32 %v614, 0.0
    %v647 = vmin.f32 %v615, 0.0
    %v648 = vmin.f32 %v616, 0.0
    %v649 = vmin.f32 %v617, 0.0
    %v650 = vmin.f32 %v618, 0.0
    %v651 = vmin.f32 %v619, 0.0
    %v652 = vmin.f32 %v620, 0.0
    %v653 = vmin.f32 %v621, 0.0
    %v654 = vmin.f32 %v622, 0.0
    %v655 = vmin.f32 %v623, 0.0
    %v656 = vmul.f32 %v640, 1.442695
    %v657 = vpow.pop %v656
    %v658 = vmul.f32 %v641, 1.442695
    %v659 = vpow.pop %v658
    %v660 = vmul.f32 %v642, 1.442695
    %v661 = vpow.pop %v660
    %v662 = vmul.f32 %v643, 1.442695
    %v663 = vpow.pop %v662
    %v664 = vmul.f32 %v644, 1.442695
    %v665 = vpow.pop %v664
    %v666 = vmul.f32 %v645, 1.442695
    %v667 = vpow.pop %v666
    %v668 = vmul.f32 %v646, 1.442695
    %v669 = vpow.pop %v668
    %v670 = vmul.f32 %v647, 1.442695
    %v671 = vpow.pop %v670
    %v672 = vmul.f32 %v648, 1.442695
    %v673 = vpow.pop %v672
    %v674 = vmul.f32 %v649, 1.442695
    %v675 = vpow.pop %v674
    %v676 = vmul.f32 %v650, 1.442695
    %v677 = vpow.pop %v676
    %v678 = vmul.f32 %v651, 1.442695
    %v679 = vpow.pop %v678
    %v680 = vmul.f32 %v652, 1.442695
    %v681 = vpow.pop %v680
    %v682 = vmul.f32 %v653, 1.442695
    %v683 = vpow.pop %v682
    %v684 = vmul.f32 %v654, 1.442695
    %v685 = vpow.pop %v684
    %v686 = vmul.f32 %v655, 1.442695
    %v687 = vpow.pop %v686
    %v688 = vsub.f32 %v657, 1.0
    %v689 = vsub.f32 %v659, 1.0
    %v690 = vsub.f32 %v661, 1.0
    %v691 = vsub.f32 %v663, 1.0
    %v692 = vsub.f32 %v665, 1.0
    %v693 = vsub.f32 %v667, 1.0
    %v694 = vsub.f32 %v669, 1.0
    %v695 = vsub.f32 %v671, 1.0
    %v696 = vsub.f32 %v673, 1.0
    %v697 = vsub.f32 %v675, 1.0
    %v698 = vsub.f32 %v677, 1.0
    %v699 = vsub.f32 %v679, 1.0
    %v700 = vsub.f32 %v681, 1.0
    %v701 = vsub.f32 %v683, 1.0
    %v702 = vsub.f32 %v685, 1.0
    %v703 = vsub.f32 %v687, 1.0
    %v704 = vsel %vm624, %v608, %v688
    %v705 = vsel %vm625, %v609, %v689
    %v706 = vsel %vm626, %v610, %v690
    %v707 = vsel %vm627, %v611, %v691
    %v708 = vsel %vm628, %v612, %v692
    %v709 = vsel %vm629, %v613, %v693
    %v710 = vsel %vm630, %v614, %v694
    %v711 = vsel %vm631, %v615, %v695
    %v712 = vsel %vm632, %v616, %v696
    %v713 = vsel %vm633, %v617, %v697
    %v714 = vsel %vm634, %v618, %v698
    %v715 = vsel %vm635, %v619, %v699
    %v716 = vsel %vm636, %v620, %v700
    %v717 = vsel %vm637, %v621, %v701
    %v718 = vsel %vm638, %v622, %v702
    %v719 = vsel %vm639, %v623, %v703
    %v720 = vpack.c.bf16 %v705, %v704
    %v721 = vpack.c.bf16 %v707, %v706
    %v722 = vpack.c.bf16 %v709, %v708
    %v723 = vpack.c.bf16 %v711, %v710
    %v724 = vpack.c.bf16 %v713, %v712
    %v725 = vpack.c.bf16 %v715, %v714
    %v726 = vpack.c.bf16 %v717, %v716
    %v727 = vpack.c.bf16 %v719, %v718
    %728 = vmatpush.bf16.msra.mxu0 %v727
    %729 = vmatpush.bf16.msra.mxu0 %v726
    %730 = vmatpush.bf16.msra.mxu0 %v725
    %731 = vmatpush.bf16.msra.mxu0 %v724
    %732 = vmatpush.bf16.msra.mxu0 %v723
    %733 = vmatpush.bf16.msra.mxu0 %v722
    %734 = vmatpush.bf16.msra.mxu0 %v721
    %735 = vmatpush.bf16.msra.mxu0 %v720
    %736 = vmatmul.bf16.gmra.mxu0 %v136
    %v737 = vpop.f32.mrf.mxu0
    %v738 = vadd.f32 0.0, %v737
    %v739 = vpop.f32.mrf.mxu0
    %v740 = vadd.f32 0.0, %v739
    %741 = vmatmul.bf16.gmra.mxu0 %v137
    %v742 = vpop.f32.mrf.mxu0
    %v743 = vadd.f32 0.0, %v742
    %v744 = vpop.f32.mrf.mxu0
    %v745 = vadd.f32 0.0, %v744
    %746 = vmatmul.bf16.gmra.mxu0 %v138
    %v747 = vpop.f32.mrf.mxu0
    %v748 = vadd.f32 0.0, %v747
    %v749 = vpop.f32.mrf.mxu0
    %v750 = vadd.f32 0.0, %v749
    %751 = vmatmul.bf16.gmra.mxu0 %v139
    %v752 = vpop.f32.mrf.mxu0
    %v753 = vadd.f32 0.0, %v752
    %v754 = vpop.f32.mrf.mxu0
    %v755 = vadd.f32 0.0, %v754
    %756 = vmatmul.bf16.gmra.mxu0 %v140
    %v757 = vpop.f32.mrf.mxu0
    %v758 = vadd.f32 0.0, %v757
    %v759 = vpop.f32.mrf.mxu0
    %v760 = vadd.f32 0.0, %v759
    %761 = vmatmul.bf16.gmra.mxu0 %v141
    %v762 = vpop.f32.mrf.mxu0
    %v763 = vadd.f32 0.0, %v762
    %v764 = vpop.f32.mrf.mxu0
    %v765 = vadd.f32 0.0, %v764
    %766 = vmatmul.bf16.gmra.mxu0 %v142
    %v767 = vpop.f32.mrf.mxu0
    %v768 = vadd.f32 0.0, %v767
    %v769 = vpop.f32.mrf.mxu0
    %v770 = vadd.f32 0.0, %v769
    %771 = vmatmul.bf16.gmra.mxu0 %v143
    %v772 = vpop.f32.mrf.mxu0
    %v773 = vadd.f32 0.0, %v772
    %v774 = vpop.f32.mrf.mxu0
    %v775 = vadd.f32 0.0, %v774
    %776 = vdwg.mxu0
    %s777 = scalar_lea.vmem [#allocation6], 256
    %v778 = vld [vmem:[%s777] sm:$0xff]
    %v779 = vld [vmem:[%s777 + $0x8] sm:$0xff]
    %v780 = vld [vmem:[%s777 + $0x10] sm:$0xff]
    %v781 = vld [vmem:[%s777 + $0x18] sm:$0xff]
    %v782 = vld [vmem:[%s777 + $0x20] sm:$0xff]
    %v783 = vld [vmem:[%s777 + $0x28] sm:$0xff]
    %v784 = vld [vmem:[%s777 + $0x30] sm:$0xff]
    %v785 = vld [vmem:[%s777 + $0x38] sm:$0xff]
    %v786 = vld [vmem:[%s777 + $0x40] sm:$0xff]
    %v787 = vld [vmem:[%s777 + $0x48] sm:$0xff]
    %v788 = vld [vmem:[%s777 + $0x50] sm:$0xff]
    %v789 = vld [vmem:[%s777 + $0x58] sm:$0xff]
    %v790 = vld [vmem:[%s777 + $0x60] sm:$0xff]
    %v791 = vld [vmem:[%s777 + $0x68] sm:$0xff]
    %v792 = vld [vmem:[%s777 + $0x70] sm:$0xff]
    %v793 = vld [vmem:[%s777 + $0x78] sm:$0xff]
    %s794 = scalar_lea.vmem [#allocation6], 384
    %v795 = vld [vmem:[%s794] sm:$0xff]
    %v796 = vld [vmem:[%s794 + $0x8] sm:$0xff]
    %v797 = vld [vmem:[%s794 + $0x10] sm:$0xff]
    %v798 = vld [vmem:[%s794 + $0x18] sm:$0xff]
    %v799 = vld [vmem:[%s794 + $0x20] sm:$0xff]
    %v800 = vld [vmem:[%s794 + $0x28] sm:$0xff]
    %v801 = vld [vmem:[%s794 + $0x30] sm:$0xff]
    %v802 = vld [vmem:[%s794 + $0x38] sm:$0xff]
    %v803 = vld [vmem:[%s794 + $0x40] sm:$0xff]
    %v804 = vld [vmem:[%s794 + $0x48] sm:$0xff]
    %v805 = vld [vmem:[%s794 + $0x50] sm:$0xff]
    %v806 = vld [vmem:[%s794 + $0x58] sm:$0xff]
    %v807 = vld [vmem:[%s794 + $0x60] sm:$0xff]
    %v808 = vld [vmem:[%s794 + $0x68] sm:$0xff]
    %v809 = vld [vmem:[%s794 + $0x70] sm:$0xff]
    %v810 = vld [vmem:[%s794 + $0x78] sm:$0xff]
    %811 = vmatpush.msra.mxu0 %v810
    %812 = vmatpush.msra.mxu0 %v809
    %813 = vmatpush.msra.mxu0 %v808
    %814 = vmatpush.msra.mxu0 %v807
    %815 = vmatpush.msra.mxu0 %v806
    %816 = vmatpush.msra.mxu0 %v805
    %817 = vmatpush.msra.mxu0 %v804
    %818 = vmatpush.msra.mxu0 %v803
    %819 = vmatpush.msra.mxu0 %v802
    %820 = vmatpush.msra.mxu0 %v801
    %821 = vmatpush.msra.mxu0 %v800
    %822 = vmatpush.msra.mxu0 %v799
    %823 = vmatpush.msra.mxu0 %v798
    %824 = vmatpush.msra.mxu0 %v797
    %825 = vmatpush.msra.mxu0 %v796
    %826 = vmatpush.msra.mxu0 %v795
    %827 = vmatmul.f32.gmra.mxu0 %v704
    %v828 = vpop.f32.mrf.mxu0
    %v829 = vadd.f32 0.0, %v828
    %830 = vmatmul.f32.gmra.mxu0 %v705
    %v831 = vpop.f32.mrf.mxu0
    %v832 = vadd.f32 0.0, %v831
    %833 = vmatmul.f32.gmra.mxu0 %v706
    %v834 = vpop.f32.mrf.mxu0
    %v835 = vadd.f32 0.0, %v834
    %836 = vmatmul.f32.gmra.mxu0 %v707
    %v837 = vpop.f32.mrf.mxu0
    %v838 = vadd.f32 0.0, %v837
    %839 = vmatmul.f32.gmra.mxu0 %v708
    %v840 = vpop.f32.mrf.mxu0
    %v841 = vadd.f32 0.0, %v840
    %842 = vmatmul.f32.gmra.mxu0 %v709
    %v843 = vpop.f32.mrf.mxu0
    %v844 = vadd.f32 0.0, %v843
    %845 = vmatmul.f32.gmra.mxu0 %v710
    %v846 = vpop.f32.mrf.mxu0
    %v847 = vadd.f32 0.0, %v846
    %848 = vmatmul.f32.gmra.mxu0 %v711
    %v849 = vpop.f32.mrf.mxu0
    %v850 = vadd.f32 0.0, %v849
    %851 = vmatmul.f32.gmra.mxu0 %v712
    %v852 = vpop.f32.mrf.mxu0
    %v853 = vadd.f32 0.0, %v852
    %854 = vmatmul.f32.gmra.mxu0 %v713
    %v855 = vpop.f32.mrf.mxu0
    %v856 = vadd.f32 0.0, %v855
    %857 = vmatmul.f32.gmra.mxu0 %v714
    %v858 = vpop.f32.mrf.mxu0
    %v859 = vadd.f32 0.0, %v858
    %860 = vmatmul.f32.gmra.mxu0 %v715
    %v861 = vpop.f32.mrf.mxu0
    %v862 = vadd.f32 0.0, %v861
    %863 = vmatmul.f32.gmra.mxu0 %v716
    %v864 = vpop.f32.mrf.mxu0
    %v865 = vadd.f32 0.0, %v864
    %866 = vmatmul.f32.gmra.mxu0 %v717
    %v867 = vpop.f32.mrf.mxu0
    %v868 = vadd.f32 0.0, %v867
    %869 = vmatmul.f32.gmra.mxu0 %v718
    %v870 = vpop.f32.mrf.mxu0
    %v871 = vadd.f32 0.0, %v870
    %872 = vmatmul.f32.gmra.mxu0 %v719
    %v873 = vpop.f32.mrf.mxu0
    %v874 = vadd.f32 0.0, %v873
    %875 = vdwg.mxu0
    %876 = vmatpush.msra.mxu0 %v793
    %877 = vmatpush.msra.mxu0 %v792
    %878 = vmatpush.msra.mxu0 %v791
    %879 = vmatpush.msra.mxu0 %v790
    %880 = vmatpush.msra.mxu0 %v789
    %881 = vmatpush.msra.mxu0 %v788
    %882 = vmatpush.msra.mxu0 %v787
    %883 = vmatpush.msra.mxu0 %v786
    %884 = vmatpush.msra.mxu0 %v785
    %885 = vmatpush.msra.mxu0 %v784
    %886 = vmatpush.msra.mxu0 %v783
    %887 = vmatpush.msra.mxu0 %v782
    %888 = vmatpush.msra.mxu0 %v781
    %889 = vmatpush.msra.mxu0 %v780
    %890 = vmatpush.msra.mxu0 %v779
    %891 = vmatpush.msra.mxu0 %v778
    %892 = vmatmul.f32.gmra.mxu0 %v738
    %v893 = vpop.f32.mrf.mxu0
    %v894 = vadd.f32 %v829, %v893
    %895 = vmatmul.f32.gmra.mxu0 %v740
    %v896 = vpop.f32.mrf.mxu0
    %v897 = vadd.f32 %v832, %v896
    %898 = vmatmul.f32.gmra.mxu0 %v743
    %v899 = vpop.f32.mrf.mxu0
    %v900 = vadd.f32 %v835, %v899
    %901 = vmatmul.f32.gmra.mxu0 %v745
    %v902 = vpop.f32.mrf.mxu0
    %v903 = vadd.f32 %v838, %v902
    %904 = vmatmul.f32.gmra.mxu0 %v748
    %v905 = vpop.f32.mrf.mxu0
    %v906 = vadd.f32 %v841, %v905
    %907 = vmatmul.f32.gmra.mxu0 %v750
    %v908 = vpop.f32.mrf.mxu0
    %v909 = vadd.f32 %v844, %v908
    %910 = vmatmul.f32.gmra.mxu0 %v753
    %v911 = vpop.f32.mrf.mxu0
    %v912 = vadd.f32 %v847, %v911
    %913 = vmatmul.f32.gmra.mxu0 %v755
    %v914 = vpop.f32.mrf.mxu0
    %v915 = vadd.f32 %v850, %v914
    %916 = vmatmul.f32.gmra.mxu0 %v758
    %v917 = vpop.f32.mrf.mxu0
    %v918 = vadd.f32 %v853, %v917
    %919 = vmatmul.f32.gmra.mxu0 %v760
    %v920 = vpop.f32.mrf.mxu0
    %v921 = vadd.f32 %v856, %v920
    %922 = vmatmul.f32.gmra.mxu0 %v763
    %v923 = vpop.f32.mrf.mxu0
    %v924 = vadd.f32 %v859, %v923
    %925 = vmatmul.f32.gmra.mxu0 %v765
    %v926 = vpop.f32.mrf.mxu0
    %v927 = vadd.f32 %v862, %v926
    %928 = vmatmul.f32.gmra.mxu0 %v768
    %v929 = vpop.f32.mrf.mxu0
    %v930 = vadd.f32 %v865, %v929
    %931 = vmatmul.f32.gmra.mxu0 %v770
    %v932 = vpop.f32.mrf.mxu0
    %v933 = vadd.f32 %v868, %v932
    %934 = vmatmul.f32.gmra.mxu0 %v773
    %v935 = vpop.f32.mrf.mxu0
    %v936 = vadd.f32 %v871, %v935
    %937 = vmatmul.f32.gmra.mxu0 %v775
    %v938 = vpop.f32.mrf.mxu0
    %v939 = vadd.f32 %v874, %v938
    %940 = vdwg.mxu0
    %s941 = scalar_lea.vmem %s3, 1
    %v942 = vld [vmem:[%s941] sm:$0x1]
    %v944 = vperm.slane %v942, 0
    %v946 = vadd.f32 %v894, %v944
    %v947 = vadd.f32 %v897, %v944
    %v948 = vadd.f32 %v900, %v944
    %v949 = vadd.f32 %v903, %v944
    %v950 = vadd.f32 %v906, %v944
    %v951 = vadd.f32 %v909, %v944
    %v952 = vadd.f32 %v912, %v944
    %v953 = vadd.f32 %v915, %v944
    %v954 = vadd.f32 %v918, %v944
    %v955 = vadd.f32 %v921, %v944
    %v956 = vadd.f32 %v924, %v944
    %v957 = vadd.f32 %v927, %v944
    %v958 = vadd.f32 %v930, %v944
    %v959 = vadd.f32 %v933, %v944
    %v960 = vadd.f32 %v936, %v944
    %v961 = vadd.f32 %v939, %v944
    %v962 = vmul.f32 %v946, %v946
    %v963 = vmul.f32 %v947, %v947
    %v964 = vmul.f32 %v948, %v948
    %v965 = vmul.f32 %v949, %v949
    %v966 = vmul.f32 %v950, %v950
    %v967 = vmul.f32 %v951, %v951
    %v968 = vmul.f32 %v952, %v952
    %v969 = vmul.f32 %v953, %v953
    %v970 = vmul.f32 %v954, %v954
    %v971 = vmul.f32 %v955, %v955
    %v972 = vmul.f32 %v956, %v956
    %v973 = vmul.f32 %v957, %v957
    %v974 = vmul.f32 %v958, %v958
    %v975 = vmul.f32 %v959, %v959
    %v976 = vmul.f32 %v960, %v960
    %v977 = vmul.f32 %v961, %v961
    %978 = vadd.xlane.f32.xlu0 %v962
    %v979 = vpop.xlane.xlu0 %978
    %980 = vadd.xlane.f32.xlu0 %v963
    %v981 = vpop.xlane.xlu0 %980
    %982 = vadd.xlane.f32.xlu0 %v964
    %v983 = vpop.xlane.xlu0 %982
    %984 = vadd.xlane.f32.xlu0 %v965
    %v985 = vpop.xlane.xlu0 %984
    %986 = vadd.xlane.f32.xlu0 %v966
    %v987 = vpop.xlane.xlu0 %986
    %988 = vadd.xlane.f32.xlu0 %v967
    %v989 = vpop.xlane.xlu0 %988
    %990 = vadd.xlane.f32.xlu0 %v968
    %v991 = vpop.xlane.xlu0 %990
    %992 = vadd.xlane.f32.xlu0 %v969
    %v993 = vpop.xlane.xlu0 %992
    %994 = vadd.xlane.f32.xlu0 %v970
    %v995 = vpop.xlane.xlu0 %994
    %996 = vadd.xlane.f32.xlu0 %v971
    %v997 = vpop.xlane.xlu0 %996
    %998 = vadd.xlane.f32.xlu0 %v972
    %v999 = vpop.xlane.xlu0 %998
    %1000 = vadd.xlane.f32.xlu0 %v973
    %v1001 = vpop.xlane.xlu0 %1000
    %1002 = vadd.xlane.f32.xlu0 %v974
    %v1003 = vpop.xlane.xlu0 %1002
    %1004 = vadd.xlane.f32.xlu0 %v975
    %v1005 = vpop.xlane.xlu0 %1004
    %1006 = vadd.xlane.f32.xlu0 %v976
    %v1007 = vpop.xlane.xlu0 %1006
    %1008 = vadd.xlane.f32.xlu0 %v977
    %v1009 = vpop.xlane.xlu0 %1008
    %v1010 = vmax.f32 %v979, 1e-24
    %v1011 = vmax.f32 %v981, 1e-24
    %v1012 = vmax.f32 %v983, 1e-24
    %v1013 = vmax.f32 %v985, 1e-24
    %v1014 = vmax.f32 %v987, 1e-24
    %v1015 = vmax.f32 %v989, 1e-24
    %v1016 = vmax.f32 %v991, 1e-24
    %v1017 = vmax.f32 %v993, 1e-24
    %v1018 = vmax.f32 %v995, 1e-24
    %v1019 = vmax.f32 %v997, 1e-24
    %v1020 = vmax.f32 %v999, 1e-24
    %v1021 = vmax.f32 %v1001, 1e-24
    %v1022 = vmax.f32 %v1003, 1e-24
    %v1023 = vmax.f32 %v1005, 1e-24
    %v1024 = vmax.f32 %v1007, 1e-24
    %v1025 = vmax.f32 %v1009, 1e-24
    %v1026 = vrsqrt.pop %v1010
    %v1027 = vmul.f32 %v1026, %v1010
    %v1028 = vmul.f32 %v1027, %v1026
    %v1029 = vmul.f32 0.5, %v1028
    %v1030 = vsub.f32 1.5, %v1029
    %v1031 = vmul.f32 %v1026, %v1030
    %vm1032 = vweird.f32 %v1010
    %vm1033 = vweird.f32 %v1026
    %vm1034 = vmor %vm1032, %vm1033
    %v1035 = vsel %vm1034, %v1026, %v1031
    %v1036 = vrsqrt.pop %v1011
    %v1037 = vmul.f32 %v1036, %v1011
    %v1038 = vmul.f32 %v1037, %v1036
    %v1039 = vmul.f32 0.5, %v1038
    %v1040 = vsub.f32 1.5, %v1039
    %v1041 = vmul.f32 %v1036, %v1040
    %vm1042 = vweird.f32 %v1011
    %vm1043 = vweird.f32 %v1036
    %vm1044 = vmor %vm1042, %vm1043
    %v1045 = vsel %vm1044, %v1036, %v1041
    %v1046 = vrsqrt.pop %v1012
    %v1047 = vmul.f32 %v1046, %v1012
    %v1048 = vmul.f32 %v1047, %v1046
    %v1049 = vmul.f32 0.5, %v1048
    %v1050 = vsub.f32 1.5, %v1049
    %v1051 = vmul.f32 %v1046, %v1050
    %vm1052 = vweird.f32 %v1012
    %vm1053 = vweird.f32 %v1046
    %vm1054 = vmor %vm1052, %vm1053
    %v1055 = vsel %vm1054, %v1046, %v1051
    %v1056 = vrsqrt.pop %v1013
    %v1057 = vmul.f32 %v1056, %v1013
    %v1058 = vmul.f32 %v1057, %v1056
    %v1059 = vmul.f32 0.5, %v1058
    %v1060 = vsub.f32 1.5, %v1059
    %v1061 = vmul.f32 %v1056, %v1060
    %vm1062 = vweird.f32 %v1013
    %vm1063 = vweird.f32 %v1056
    %vm1064 = vmor %vm1062, %vm1063
    %v1065 = vsel %vm1064, %v1056, %v1061
    %v1066 = vrsqrt.pop %v1014
    %v1067 = vmul.f32 %v1066, %v1014
    %v1068 = vmul.f32 %v1067, %v1066
    %v1069 = vmul.f32 0.5, %v1068
    %v1070 = vsub.f32 1.5, %v1069
    %v1071 = vmul.f32 %v1066, %v1070
    %vm1072 = vweird.f32 %v1014
    %vm1073 = vweird.f32 %v1066
    %vm1074 = vmor %vm1072, %vm1073
    %v1075 = vsel %vm1074, %v1066, %v1071
    %v1076 = vrsqrt.pop %v1015
    %v1077 = vmul.f32 %v1076, %v1015
    %v1078 = vmul.f32 %v1077, %v1076
    %v1079 = vmul.f32 0.5, %v1078
    %v1080 = vsub.f32 1.5, %v1079
    %v1081 = vmul.f32 %v1076, %v1080
    %vm1082 = vweird.f32 %v1015
    %vm1083 = vweird.f32 %v1076
    %vm1084 = vmor %vm1082, %vm1083
    %v1085 = vsel %vm1084, %v1076, %v1081
    %v1086 = vrsqrt.pop %v1016
    %v1087 = vmul.f32 %v1086, %v1016
    %v1088 = vmul.f32 %v1087, %v1086
    %v1089 = vmul.f32 0.5, %v1088
    %v1090 = vsub.f32 1.5, %v1089
    %v1091 = vmul.f32 %v1086, %v1090
    %vm1092 = vweird.f32 %v1016
    %vm1093 = vweird.f32 %v1086
    %vm1094 = vmor %vm1092, %vm1093
    %v1095 = vsel %vm1094, %v1086, %v1091
    %v1096 = vrsqrt.pop %v1017
    %v1097 = vmul.f32 %v1096, %v1017
    %v1098 = vmul.f32 %v1097, %v1096
    %v1099 = vmul.f32 0.5, %v1098
    %v1100 = vsub.f32 1.5, %v1099
    %v1101 = vmul.f32 %v1096, %v1100
    %vm1102 = vweird.f32 %v1017
    %vm1103 = vweird.f32 %v1096
    %vm1104 = vmor %vm1102, %vm1103
    %v1105 = vsel %vm1104, %v1096, %v1101
    %v1106 = vrsqrt.pop %v1018
    %v1107 = vmul.f32 %v1106, %v1018
    %v1108 = vmul.f32 %v1107, %v1106
    %v1109 = vmul.f32 0.5, %v1108
    %v1110 = vsub.f32 1.5, %v1109
    %v1111 = vmul.f32 %v1106, %v1110
    %vm1112 = vweird.f32 %v1018
    %vm1113 = vweird.f32 %v1106
    %vm1114 = vmor %vm1112, %vm1113
    %v1115 = vsel %vm1114, %v1106, %v1111
    %v1116 = vrsqrt.pop %v1019
    %v1117 = vmul.f32 %v1116, %v1019
    %v1118 = vmul.f32 %v1117, %v1116
    %v1119 = vmul.f32 0.5, %v1118
    %v1120 = vsub.f32 1.5, %v1119
    %v1121 = vmul.f32 %v1116, %v1120
    %vm1122 = vweird.f32 %v1019
    %vm1123 = vweird.f32 %v1116
    %vm1124 = vmor %vm1122, %vm1123
    %v1125 = vsel %vm1124, %v1116, %v1121
    %v1126 = vrsqrt.pop %v1020
    %v1127 = vmul.f32 %v1126, %v1020
    %v1128 = vmul.f32 %v1127, %v1126
    %v1129 = vmul.f32 0.5, %v1128
    %v1130 = vsub.f32 1.5, %v1129
    %v1131 = vmul.f32 %v1126, %v1130
    %vm1132 = vweird.f32 %v1020
    %vm1133 = vweird.f32 %v1126
    %vm1134 = vmor %vm1132, %vm1133
    %v1135 = vsel %vm1134, %v1126, %v1131
    %v1136 = vrsqrt.pop %v1021
    %v1137 = vmul.f32 %v1136, %v1021
    %v1138 = vmul.f32 %v1137, %v1136
    %v1139 = vmul.f32 0.5, %v1138
    %v1140 = vsub.f32 1.5, %v1139
    %v1141 = vmul.f32 %v1136, %v1140
    %vm1142 = vweird.f32 %v1021
    %vm1143 = vweird.f32 %v1136
    %vm1144 = vmor %vm1142, %vm1143
    %v1145 = vsel %vm1144, %v1136, %v1141
    %v1146 = vrsqrt.pop %v1022
    %v1147 = vmul.f32 %v1146, %v1022
    %v1148 = vmul.f32 %v1147, %v1146
    %v1149 = vmul.f32 0.5, %v1148
    %v1150 = vsub.f32 1.5, %v1149
    %v1151 = vmul.f32 %v1146, %v1150
    %vm1152 = vweird.f32 %v1022
    %vm1153 = vweird.f32 %v1146
    %vm1154 = vmor %vm1152, %vm1153
    %v1155 = vsel %vm1154, %v1146, %v1151
    %v1156 = vrsqrt.pop %v1023
    %v1157 = vmul.f32 %v1156, %v1023
    %v1158 = vmul.f32 %v1157, %v1156
    %v1159 = vmul.f32 0.5, %v1158
    %v1160 = vsub.f32 1.5, %v1159
    %v1161 = vmul.f32 %v1156, %v1160
    %vm1162 = vweird.f32 %v1023
    %vm1163 = vweird.f32 %v1156
    %vm1164 = vmor %vm1162, %vm1163
    %v1165 = vsel %vm1164, %v1156, %v1161
    %v1166 = vrsqrt.pop %v1024
    %v1167 = vmul.f32 %v1166, %v1024
    %v1168 = vmul.f32 %v1167, %v1166
    %v1169 = vmul.f32 0.5, %v1168
    %v1170 = vsub.f32 1.5, %v1169
    %v1171 = vmul.f32 %v1166, %v1170
    %vm1172 = vweird.f32 %v1024
    %vm1173 = vweird.f32 %v1166
    %vm1174 = vmor %vm1172, %vm1173
    %v1175 = vsel %vm1174, %v1166, %v1171
    %v1176 = vrsqrt.pop %v1025
    %v1177 = vmul.f32 %v1176, %v1025
    %v1178 = vmul.f32 %v1177, %v1176
    %v1179 = vmul.f32 0.5, %v1178
    %v1180 = vsub.f32 1.5, %v1179
    %v1181 = vmul.f32 %v1176, %v1180
    %vm1182 = vweird.f32 %v1025
    %vm1183 = vweird.f32 %v1176
    %vm1184 = vmor %vm1182, %vm1183
    %v1185 = vsel %vm1184, %v1176, %v1181
    %v1186 = vmul.f32 %v946, %v1035
    %v1187 = vmul.f32 %v947, %v1045
    %v1188 = vmul.f32 %v948, %v1055
    %v1189 = vmul.f32 %v949, %v1065
    %v1190 = vmul.f32 %v950, %v1075
    %v1191 = vmul.f32 %v951, %v1085
    %v1192 = vmul.f32 %v952, %v1095
    %v1193 = vmul.f32 %v953, %v1105
    %v1194 = vmul.f32 %v954, %v1115
    %v1195 = vmul.f32 %v955, %v1125
    %v1196 = vmul.f32 %v956, %v1135
    %v1197 = vmul.f32 %v957, %v1145
    %v1198 = vmul.f32 %v958, %v1155
    %v1199 = vmul.f32 %v959, %v1165
    %v1200 = vmul.f32 %v960, %v1175
    %v1201 = vmul.f32 %v961, %v1185
    %vm1202 = vcmp.gt.f32.partialorder %v1186, 0.0
    %vm1203 = vcmp.gt.f32.partialorder %v1187, 0.0
    %vm1204 = vcmp.gt.f32.partialorder %v1188, 0.0
    %vm1205 = vcmp.gt.f32.partialorder %v1189, 0.0
    %vm1206 = vcmp.gt.f32.partialorder %v1190, 0.0
    %vm1207 = vcmp.gt.f32.partialorder %v1191, 0.0
    %vm1208 = vcmp.gt.f32.partialorder %v1192, 0.0
    %vm1209 = vcmp.gt.f32.partialorder %v1193, 0.0
    %vm1210 = vcmp.gt.f32.partialorder %v1194, 0.0
    %vm1211 = vcmp.gt.f32.partialorder %v1195, 0.0
    %vm1212 = vcmp.gt.f32.partialorder %v1196, 0.0
    %vm1213 = vcmp.gt.f32.partialorder %v1197, 0.0
    %vm1214 = vcmp.gt.f32.partialorder %v1198, 0.0
    %vm1215 = vcmp.gt.f32.partialorder %v1199, 0.0
    %vm1216 = vcmp.gt.f32.partialorder %v1200, 0.0
    %vm1217 = vcmp.gt.f32.partialorder %v1201, 0.0
    %v1218 = vmin.f32 %v1186, 0.0
    %v1219 = vmin.f32 %v1187, 0.0
    %v1220 = vmin.f32 %v1188, 0.0
    %v1221 = vmin.f32 %v1189, 0.0
    %v1222 = vmin.f32 %v1190, 0.0
    %v1223 = vmin.f32 %v1191, 0.0
    %v1224 = vmin.f32 %v1192, 0.0
    %v1225 = vmin.f32 %v1193, 0.0
    %v1226 = vmin.f32 %v1194, 0.0
    %v1227 = vmin.f32 %v1195, 0.0
    %v1228 = vmin.f32 %v1196, 0.0
    %v1229 = vmin.f32 %v1197, 0.0
    %v1230 = vmin.f32 %v1198, 0.0
    %v1231 = vmin.f32 %v1199, 0.0
    %v1232 = vmin.f32 %v1200, 0.0
    %v1233 = vmin.f32 %v1201, 0.0
    %v1234 = vmul.f32 %v1218, 1.442695
    %v1235 = vpow.pop %v1234
    %v1236 = vmul.f32 %v1219, 1.442695
    %v1237 = vpow.pop %v1236
    %v1238 = vmul.f32 %v1220, 1.442695
    %v1239 = vpow.pop %v1238
    %v1240 = vmul.f32 %v1221, 1.442695
    %v1241 = vpow.pop %v1240
    %v1242 = vmul.f32 %v1222, 1.442695
    %v1243 = vpow.pop %v1242
    %v1244 = vmul.f32 %v1223, 1.442695
    %v1245 = vpow.pop %v1244
    %v1246 = vmul.f32 %v1224, 1.442695
    %v1247 = vpow.pop %v1246
    %v1248 = vmul.f32 %v1225, 1.442695
    %v1249 = vpow.pop %v1248
    %v1250 = vmul.f32 %v1226, 1.442695
    %v1251 = vpow.pop %v1250
    %v1252 = vmul.f32 %v1227, 1.442695
    %v1253 = vpow.pop %v1252
    %v1254 = vmul.f32 %v1228, 1.442695
    %v1255 = vpow.pop %v1254
    %v1256 = vmul.f32 %v1229, 1.442695
    %v1257 = vpow.pop %v1256
    %v1258 = vmul.f32 %v1230, 1.442695
    %v1259 = vpow.pop %v1258
    %v1260 = vmul.f32 %v1231, 1.442695
    %v1261 = vpow.pop %v1260
    %v1262 = vmul.f32 %v1232, 1.442695
    %v1263 = vpow.pop %v1262
    %v1264 = vmul.f32 %v1233, 1.442695
    %v1265 = vpow.pop %v1264
    %v1266 = vsub.f32 %v1235, 1.0
    %v1267 = vsub.f32 %v1237, 1.0
    %v1268 = vsub.f32 %v1239, 1.0
    %v1269 = vsub.f32 %v1241, 1.0
    %v1270 = vsub.f32 %v1243, 1.0
    %v1271 = vsub.f32 %v1245, 1.0
    %v1272 = vsub.f32 %v1247, 1.0
    %v1273 = vsub.f32 %v1249, 1.0
    %v1274 = vsub.f32 %v1251, 1.0
    %v1275 = vsub.f32 %v1253, 1.0
    %v1276 = vsub.f32 %v1255, 1.0
    %v1277 = vsub.f32 %v1257, 1.0
    %v1278 = vsub.f32 %v1259, 1.0
    %v1279 = vsub.f32 %v1261, 1.0
    %v1280 = vsub.f32 %v1263, 1.0
    %v1281 = vsub.f32 %v1265, 1.0
    %v1282 = vsel %vm1202, %v1186, %v1266
    %v1283 = vsel %vm1203, %v1187, %v1267
    %v1284 = vsel %vm1204, %v1188, %v1268
    %v1285 = vsel %vm1205, %v1189, %v1269
    %v1286 = vsel %vm1206, %v1190, %v1270
    %v1287 = vsel %vm1207, %v1191, %v1271
    %v1288 = vsel %vm1208, %v1192, %v1272
    %v1289 = vsel %vm1209, %v1193, %v1273
    %v1290 = vsel %vm1210, %v1194, %v1274
    %v1291 = vsel %vm1211, %v1195, %v1275
    %v1292 = vsel %vm1212, %v1196, %v1276
    %v1293 = vsel %vm1213, %v1197, %v1277
    %v1294 = vsel %vm1214, %v1198, %v1278
    %v1295 = vsel %vm1215, %v1199, %v1279
    %v1296 = vsel %vm1216, %v1200, %v1280
    %v1297 = vsel %vm1217, %v1201, %v1281
    %1298 = vst [vmem:[%s4] sm:$0xff] %v1282
    %1299 = vst [vmem:[%s4 + $0x8] sm:$0xff] %v1283
    %1300 = vst [vmem:[%s4 + $0x10] sm:$0xff] %v1284
    %1301 = vst [vmem:[%s4 + $0x18] sm:$0xff] %v1285
    %1302 = vst [vmem:[%s4 + $0x20] sm:$0xff] %v1286
    %1303 = vst [vmem:[%s4 + $0x28] sm:$0xff] %v1287
    %1304 = vst [vmem:[%s4 + $0x30] sm:$0xff] %v1288
    %1305 = vst [vmem:[%s4 + $0x38] sm:$0xff] %v1289
    %1306 = vst [vmem:[%s4 + $0x40] sm:$0xff] %v1290
    %1307 = vst [vmem:[%s4 + $0x48] sm:$0xff] %v1291
    %1308 = vst [vmem:[%s4 + $0x50] sm:$0xff] %v1292
    %1309 = vst [vmem:[%s4 + $0x58] sm:$0xff] %v1293
    %1310 = vst [vmem:[%s4 + $0x60] sm:$0xff] %v1294
    %1311 = vst [vmem:[%s4 + $0x68] sm:$0xff] %v1295
    %1312 = vst [vmem:[%s4 + $0x70] sm:$0xff] %v1296
    %1313 = vst [vmem:[%s4 + $0x78] sm:$0xff] %v1297
    // Predicated region
    $region30: #{graphsage_forward.1} parent=1 // pred_check
      _
    $region31: #{graphsage_forward.1} parent=1 // pred_check_branch
      %1315 = sbr.rel (0) target = $region33
    $region32: #{graphsage_forward.1} parent=1 // pred_region
      _
    $region33: #{graphsage_forward.1} parent=1 // pred_fallthru
      _
    // Predicated region
    $region34: #{graphsage_forward.1} parent=1 // pred_check
      _
    $region35: #{graphsage_forward.1} parent=1 // pred_check_branch
      %1317 = sbr.rel (0) target = $region37
    $region36: #{graphsage_forward.1} parent=1 // pred_region
      _
    $region37: #{graphsage_forward.1} parent=1 // pred_fallthru
      _
    %1318 = vsyncpa [#allocation3], 1
    %1319 = vsyncpa [#allocation5], 1

</llo_original>
